<compile_context>
chip_gen: v5e
topology: v5e:2x2
jax: 0.10.0
libtpu: 0.0.40
codegen_flags: <defaults>
</compile_context>

<pallas_src>
import functools

import jax
import jax.numpy as jnp
from jax.experimental import pallas as pl
from jax.experimental.pallas import tpu as pltpu

LANES = 128
SUBLANES = 8


def _round_up(x, m):
    return (x + m - 1) // m * m


def pack_params(params):
    """Pack all (W, b) pairs into ONE zero-padded f32 buffer (single DMA).

    Per layer (transposed layout):
      rows [w_off, w_off+fo_pad): W^T (fan_out x fan_in) stored at lanes [0, fan_in)
      rows [b_off, b_off+fo_pad): bias stored as a column at lane 0
    Padding rows/lanes are exactly zero, so ghost activations in padded rows of h
    (sigmoid(0) = 0.5) can never leak into live outputs.
    Returns (packed, layer_meta) with layer_meta = ((w_off, b_off, fi_pad, fo_pad), ...).
    """
    entries, metas = [], []
    row, max_fi = 0, SUBLANES
    for w, b in params:
        fi, fo = w.shape
        fi_p = _round_up(fi, SUBLANES)
        fo_p = _round_up(fo, SUBLANES)
        max_fi = max(max_fi, fi_p)
        w_off = row
        entries.append((w_off, jnp.transpose(w).astype(jnp.float32)))        # (fo, fi)
        row += fo_p
        b_off = row
        entries.append((b_off, jnp.reshape(b, (-1, 1)).astype(jnp.float32)))  # (fo, 1)
        row += fo_p
        metas.append((w_off, b_off, fi_p, fo_p))
    buf = jnp.zeros((_round_up(row, SUBLANES), max_fi), jnp.float32)
    for off, arr in entries:
        buf = buf.at[off:off + arr.shape[0], :arr.shape[1]].set(arr)
    return buf, tuple(metas)


def _mlp_kernel(x_ref, p_ref, o_ref, *, layer_meta, n_output):
    """Whole 5-layer MLP on one transposed (features, TILE_B) batch tile.

    Per layer: one MXU matmul W^T(fo_pad, fi_pad) @ h(fi_pad, TILE_B) with f32
    accumulation, bias added as a (fo_pad, 1) lane-broadcast column, and the
    sigmoid (exp on the EUP + approximate reciprocal) evaluated only on the
    fo_pad (=8) live sublanes rather than a full 128-lane slab.
    """
    h = x_ref[...]                                   # (fi_pad_0, TILE_B) f32
    n_layers = len(layer_meta)
    for li, (w_off, b_off, fi_p, fo_p) in enumerate(layer_meta):
        w = p_ref[w_off:w_off + fo_p, 0:fi_p]        # static slices of resident params
        b = p_ref[b_off:b_off + fo_p, 0:1]           # (fo_pad, 1) bias column
        acc = jnp.dot(w, h, preferred_element_type=jnp.float32) + b
        if li < n_layers - 1:
            acc = jnp.clip(acc, -30.0, 30.0)         # keep exp finite (stable sigmoid)
            acc = pl.reciprocal(1.0 + jnp.exp(-acc), approx=True)
        h = acc
    o_ref[...] = h[:n_output, :]                     # lane-dense (18, TILE_B) store


def mynn_forward(x, packed, layer_meta, n_output, *, tile_b=2048):
    """x: (B, nInput) f32 -> (B, nOutput) f32 via one Pallas call."""
    B, n_input = x.shape
    in_rows = layer_meta[0][2]                       # padded input feature rows (16)

    # Batch lives in the lane dimension: tiles are multiples of 128 lanes, capped so
    # large batches split into >= 2 grid steps (v7x has two TensorCores sharing HBM).
    b_ceil = _round_up(B, LANES)
    half = _round_up(-(-b_ceil // 2), LANES)
    tile_b = max(LANES, min(tile_b, half))
    b_pad = _round_up(b_ceil, tile_b)

    # Compact transposed input (16, B_pad) instead of a 128-lane-padded slab.
    x_t = jnp.pad(jnp.transpose(x.astype(jnp.float32)),
                  ((0, in_rows - n_input), (0, b_pad - B)))

    out_t = pl.pallas_call(
        functools.partial(_mlp_kernel, layer_meta=layer_meta, n_output=n_output),
        out_shape=jax.ShapeDtypeStruct((n_output, b_pad), jnp.float32),
        grid_spec=pltpu.PrefetchScalarGridSpec(
            num_scalar_prefetch=0,
            grid=(b_pad // tile_b,),
            in_specs=[
                pl.BlockSpec((in_rows, tile_b), lambda i: (0, i)),   # x^T batch tile
                pl.BlockSpec(packed.shape, lambda i: (0, 0)),        # params: resident, 1 DMA
            ],
            out_specs=pl.BlockSpec((n_output, tile_b), lambda i: (0, i)),
        ),
        compiler_params=pltpu.CompilerParams(
            dimension_semantics=("parallel",),       # batch tiles shard across TCs (v7x)
        ),
    )(x_t, packed)

    return jnp.transpose(out_t[:, :B])               # (B, nOutput)


def init_params(key, n_input=12, n_hidden=3, n_output=18):
    """Deterministic PyTorch-style uniform(-1/sqrt(fan_in), 1/sqrt(fan_in)) init."""
    dims = [(n_input, n_hidden),
            (n_hidden, n_hidden),
            (n_hidden, n_hidden),
            (n_hidden, n_hidden),
            (n_hidden, n_output)]
    params = []
    for fan_in, fan_out in dims:
        key, kw, kb = jax.random.split(key, 3)
        bound = 1.0 / jnp.sqrt(jnp.float32(fan_in))
        w = jax.random.uniform(kw, (fan_in, fan_out), jnp.float32, -bound, bound)
        b = jax.random.uniform(kb, (1, fan_out), jnp.float32, -bound, bound)
        params.append((w, b))
    return params


def mynn_reference(x, params):
    """Pure-JAX reference (exact sigmoid) for correctness check."""
    h = x
    for i, (w, b) in enumerate(params):
        h = h @ w + b
        if i < len(params) - 1:
            h = jax.nn.sigmoid(h)
    return h


if __name__ == "__main__":
    key = jax.random.PRNGKey(0)
    key, kx = jax.random.split(key)

    n_input, n_hidden, n_output = 12, 3, 18
    batch = 8

    x = jax.random.normal(kx, (batch, n_input), jnp.float32)
    params = init_params(key, n_input, n_hidden, n_output)
    packed, layer_meta = pack_params(params)

    out = mynn_forward(x, packed, layer_meta, n_output)
    out = jax.block_until_ready(out)

    ref = mynn_reference(x, params)
    assert out.shape == (batch, n_output)
    # Tolerance is looser than f32 ulp because sigmoid uses the EUP approximate
    # reciprocal (vrcp); observed error is O(1e-4), bounded comfortably by 1e-2.
    assert jnp.allclose(out, ref, atol=1e-2, rtol=1e-2), float(jnp.max(jnp.abs(out - ref)))

    print("KERNEL_OK")
</pallas_src>

<mosaic_0001>
module attributes {stable_mosaic.version = 11 : i64} {
  func.func @_mlp_kernel(%arg0: i32, %arg1: memref<16x128xf32, #tpu.memory_space<vmem>>, %arg2: memref<112x16xf32, #tpu.memory_space<vmem>>, %arg3: memref<18x128xf32, #tpu.memory_space<vmem>>) attributes {dimension_semantics = [#tpu.dimension_semantics<parallel>], iteration_bounds = array<i64: 1>, scalar_prefetch = 0 : i64, scratch_operands = 0 : i64, tpu.core_type = #tpu.core_type<tc>, window_params = [{transform_indices = @transform_0, window_bounds = array<i64: 16, 128>}, {pipeline_mode = #tpu.pipeline_mode<synchronous>, transform_indices = @transform_1, window_bounds = array<i64: 112, 16>}, {transform_indices = @transform_2, window_bounds = array<i64: 18, 128>}]} {
    %c0 = arith.constant 0 : index
    %c0_0 = arith.constant 0 : index
    %0 = vector.load %arg1[%c0, %c0_0] : memref<16x128xf32, #tpu.memory_space<vmem>>, vector<16x128xf32>
    %c0_1 = arith.constant 0 : index
    %c0_2 = arith.constant 0 : index
    %1 = vector.load %arg2[%c0_1, %c0_2] : memref<112x16xf32, #tpu.memory_space<vmem>>, vector<8x16xf32>
    %c8 = arith.constant 8 : index
    %c0_3 = arith.constant 0 : index
    %2 = vector.load %arg2[%c8, %c0_3] : memref<112x16xf32, #tpu.memory_space<vmem>>, vector<8x1xf32>
    %cst = arith.constant dense<0.000000e+00> : vector<8x128xf32>
    %3 = tpu.matmul %1, %0, %cst {dimension_numbers = #tpu.dot_dimension_numbers<[1], [0], [0], [1], [0, 0, 1, 1], [], []>} : vector<8x16xf32>, vector<16x128xf32>, vector<8x128xf32> -> vector<8x128xf32>
    %4 = vector.broadcast %2 : vector<8x1xf32> to vector<8x128xf32>
    %5 = arith.addf %3, %4 : vector<8x128xf32>
    %cst_4 = arith.constant -3.000000e+01 : f32
    %cst_5 = arith.constant 3.000000e+01 : f32
    %6 = vector.broadcast %cst_4 : f32 to vector<8x128xf32>
    %7 = arith.maximumf %6, %5 : vector<8x128xf32>
    %8 = vector.broadcast %cst_5 : f32 to vector<8x128xf32>
    %9 = arith.minimumf %8, %7 : vector<8x128xf32>
    %cst_6 = arith.constant 0.000000e+00 : f32
    %10 = vector.broadcast %cst_6 : f32 to vector<8x128xf32>
    %11 = arith.subf %10, %9 : vector<8x128xf32>
    %12 = math.exp %11 : vector<8x128xf32>
    %cst_7 = arith.constant 1.000000e+00 : f32
    %13 = vector.broadcast %cst_7 : f32 to vector<8x128xf32>
    %14 = arith.addf %13, %12 : vector<8x128xf32>
    %15 = tpu.reciprocal %14 {approx = true} : vector<8x128xf32> -> vector<8x128xf32>
    %c16 = arith.constant 16 : index
    %c0_8 = arith.constant 0 : index
    %16 = vector.load %arg2[%c16, %c0_8] : memref<112x16xf32, #tpu.memory_space<vmem>>, vector<8x8xf32>
    %c24 = arith.constant 24 : index
    %c0_9 = arith.constant 0 : index
    %17 = vector.load %arg2[%c24, %c0_9] : memref<112x16xf32, #tpu.memory_space<vmem>>, vector<8x1xf32>
    %cst_10 = arith.constant dense<0.000000e+00> : vector<8x128xf32>
    %18 = tpu.matmul %16, %15, %cst_10 {dimension_numbers = #tpu.dot_dimension_numbers<[1], [0], [0], [1], [0, 0, 1, 1], [], []>} : vector<8x8xf32>, vector<8x128xf32>, vector<8x128xf32> -> vector<8x128xf32>
    %19 = vector.broadcast %17 : vector<8x1xf32> to vector<8x128xf32>
    %20 = arith.addf %18, %19 : vector<8x128xf32>
    %cst_11 = arith.constant -3.000000e+01 : f32
    %cst_12 = arith.constant 3.000000e+01 : f32
    %21 = vector.broadcast %cst_11 : f32 to vector<8x128xf32>
    %22 = arith.maximumf %21, %20 : vector<8x128xf32>
    %23 = vector.broadcast %cst_12 : f32 to vector<8x128xf32>
    %24 = arith.minimumf %23, %22 : vector<8x128xf32>
    %cst_13 = arith.constant 0.000000e+00 : f32
    %25 = vector.broadcast %cst_13 : f32 to vector<8x128xf32>
    %26 = arith.subf %25, %24 : vector<8x128xf32>
    %27 = math.exp %26 : vector<8x128xf32>
    %cst_14 = arith.constant 1.000000e+00 : f32
    %28 = vector.broadcast %cst_14 : f32 to vector<8x128xf32>
    %29 = arith.addf %28, %27 : vector<8x128xf32>
    %30 = tpu.reciprocal %29 {approx = true} : vector<8x128xf32> -> vector<8x128xf32>
    %c32 = arith.constant 32 : index
    %c0_15 = arith.constant 0 : index
    %31 = vector.load %arg2[%c32, %c0_15] : memref<112x16xf32, #tpu.memory_space<vmem>>, vector<8x8xf32>
    %c40 = arith.constant 40 : index
    %c0_16 = arith.constant 0 : index
    %32 = vector.load %arg2[%c40, %c0_16] : memref<112x16xf32, #tpu.memory_space<vmem>>, vector<8x1xf32>
    %cst_17 = arith.constant dense<0.000000e+00> : vector<8x128xf32>
    %33 = tpu.matmul %31, %30, %cst_17 {dimension_numbers = #tpu.dot_dimension_numbers<[1], [0], [0], [1], [0, 0, 1, 1], [], []>} : vector<8x8xf32>, vector<8x128xf32>, vector<8x128xf32> -> vector<8x128xf32>
    %34 = vector.broadcast %32 : vector<8x1xf32> to vector<8x128xf32>
    %35 = arith.addf %33, %34 : vector<8x128xf32>
    %cst_18 = arith.constant -3.000000e+01 : f32
    %cst_19 = arith.constant 3.000000e+01 : f32
    %36 = vector.broadcast %cst_18 : f32 to vector<8x128xf32>
    %37 = arith.maximumf %36, %35 : vector<8x128xf32>
    %38 = vector.broadcast %cst_19 : f32 to vector<8x128xf32>
    %39 = arith.minimumf %38, %37 : vector<8x128xf32>
    %cst_20 = arith.constant 0.000000e+00 : f32
    %40 = vector.broadcast %cst_20 : f32 to vector<8x128xf32>
    %41 = arith.subf %40, %39 : vector<8x128xf32>
    %42 = math.exp %41 : vector<8x128xf32>
    %cst_21 = arith.constant 1.000000e+00 : f32
    %43 = vector.broadcast %cst_21 : f32 to vector<8x128xf32>
    %44 = arith.addf %43, %42 : vector<8x128xf32>
    %45 = tpu.reciprocal %44 {approx = true} : vector<8x128xf32> -> vector<8x128xf32>
    %c48 = arith.constant 48 : index
    %c0_22 = arith.constant 0 : index
    %46 = vector.load %arg2[%c48, %c0_22] : memref<112x16xf32, #tpu.memory_space<vmem>>, vector<8x8xf32>
    %c56 = arith.constant 56 : index
    %c0_23 = arith.constant 0 : index
    %47 = vector.load %arg2[%c56, %c0_23] : memref<112x16xf32, #tpu.memory_space<vmem>>, vector<8x1xf32>
    %cst_24 = arith.constant dense<0.000000e+00> : vector<8x128xf32>
    %48 = tpu.matmul %46, %45, %cst_24 {dimension_numbers = #tpu.dot_dimension_numbers<[1], [0], [0], [1], [0, 0, 1, 1], [], []>} : vector<8x8xf32>, vector<8x128xf32>, vector<8x128xf32> -> vector<8x128xf32>
    %49 = vector.broadcast %47 : vector<8x1xf32> to vector<8x128xf32>
    %50 = arith.addf %48, %49 : vector<8x128xf32>
    %cst_25 = arith.constant -3.000000e+01 : f32
    %cst_26 = arith.constant 3.000000e+01 : f32
    %51 = vector.broadcast %cst_25 : f32 to vector<8x128xf32>
    %52 = arith.maximumf %51, %50 : vector<8x128xf32>
    %53 = vector.broadcast %cst_26 : f32 to vector<8x128xf32>
    %54 = arith.minimumf %53, %52 : vector<8x128xf32>
    %cst_27 = arith.constant 0.000000e+00 : f32
    %55 = vector.broadcast %cst_27 : f32 to vector<8x128xf32>
    %56 = arith.subf %55, %54 : vector<8x128xf32>
    %57 = math.exp %56 : vector<8x128xf32>
    %cst_28 = arith.constant 1.000000e+00 : f32
    %58 = vector.broadcast %cst_28 : f32 to vector<8x128xf32>
    %59 = arith.addf %58, %57 : vector<8x128xf32>
    %60 = tpu.reciprocal %59 {approx = true} : vector<8x128xf32> -> vector<8x128xf32>
    %c64 = arith.constant 64 : index
    %c0_29 = arith.constant 0 : index
    %61 = vector.load %arg2[%c64, %c0_29] : memref<112x16xf32, #tpu.memory_space<vmem>>, vector<24x8xf32>
    %c88 = arith.constant 88 : index
    %c0_30 = arith.constant 0 : index
    %62 = vector.load %arg2[%c88, %c0_30] : memref<112x16xf32, #tpu.memory_space<vmem>>, vector<24x1xf32>
    %cst_31 = arith.constant dense<0.000000e+00> : vector<24x128xf32>
    %63 = tpu.matmul %61, %60, %cst_31 {dimension_numbers = #tpu.dot_dimension_numbers<[1], [0], [0], [1], [0, 0, 1, 1], [], []>} : vector<24x8xf32>, vector<8x128xf32>, vector<24x128xf32> -> vector<24x128xf32>
    %64 = vector.broadcast %62 : vector<24x1xf32> to vector<24x128xf32>
    %65 = arith.addf %63, %64 : vector<24x128xf32>
    %66 = vector.extract_strided_slice %65 {offsets = [0, 0], sizes = [18, 128], strides = [1, 1]} : vector<24x128xf32> to vector<18x128xf32>
    %c0_32 = arith.constant 0 : index
    %c0_33 = arith.constant 0 : index
    %67 = vector.load %arg3[%c0_32, %c0_33] : memref<18x128xf32, #tpu.memory_space<vmem>>, vector<18x128xf32>
    tpu.vector_store %arg3[%c0_32, %c0_33], %66 {strides = array<i32>} : memref<18x128xf32, #tpu.memory_space<vmem>>, vector<18x128xf32>,
    return
  }
  func.func @transform_0(%arg0: i32) -> (i32, i32) {
    %c0_i32 = arith.constant 0 : i32
    %c0_i32_0 = arith.constant 0 : i32
    return %c0_i32, %arg0 : i32, i32
  }
  func.func @transform_1(%arg0: i32) -> (i32, i32) {
    %c0_i32 = arith.constant 0 : i32
    %c0_i32_0 = arith.constant 0 : i32
    %c0_i32_1 = arith.constant 0 : i32
    return %c0_i32, %c0_i32_0 : i32, i32
  }
  func.func @transform_2(%arg0: i32) -> (i32, i32) {
    %c0_i32 = arith.constant 0 : i32
    %c0_i32_0 = arith.constant 0 : i32
    return %c0_i32, %arg0 : i32, i32
  }
}

</mosaic_0001>

<llo_original>
// kernel: tpu_custom_call.1
$region0: #{tpu_custom_call.1}
  #allocation0 [shape = 'u32[]', space=smem, size = 0x4, offset = 0x4, fixed_abs, tag = 'smem constant byte address 0x4 - core index']
  #allocation1 [shape = 'u32[72,128]{1,0:T(1,128)}', space=vmem, size = 0x9000, scoped, tag = 'internal scratch']
  %s0 = inlined_call_operand.vmem [shape: f32[16,128], index: 0, kind: input, shape index: {}]
  %s1 = inlined_call_operand.vmem [shape: f32[112,16], index: 1, kind: input, shape index: {}]
  %s2 = inlined_call_operand.hbm [shape: f32[18,128], index: 2, kind: output, shape index: {}]
  %s3 = sld [smem:[#allocation0]]
  $region18: #{tpu_custom_call.1} parent=0
    _
  %s5 = ssub.s32 1, %s3
  %s6 = scalar_select 0, %s5, %s3
  $region1: #{tpu_custom_call.1} parent=0
    #allocation2 [shape = 'u8[12288]{0}', space=vmem, size = 0x3000, scoped, tag = 'output window, operand 0, single buffered']
    #allocation3 [shape = 's32[1]{0}', space=sflag, size = 0x4, scoped, tag = 'scoped memory for tpu_custom_call.1']
    %7 = vsyncpa [#allocation3], 0
    // Predicated region
    $region2: #{tpu_custom_call.1} parent=1 // pred_check
      _
    $region3: #{tpu_custom_call.1} parent=1 // pred_check_branch
      %9 = sbr.rel (0) target = $region5
    $region4: #{tpu_custom_call.1} parent=1 // pred_region
      _
    $region5: #{tpu_custom_call.1} parent=1 // pred_fallthru
      _
    // Predicated region
    $region6: #{tpu_custom_call.1} parent=1 // pred_check
      _
    $region7: #{tpu_custom_call.1} parent=1 // pred_check_branch
      %11 = sbr.rel (0) target = $region9
    $region8: #{tpu_custom_call.1} parent=1 // pred_region
      _
    $region9: #{tpu_custom_call.1} parent=1 // pred_fallthru
      _
    %v12 = vld [vmem:[%s0] sm:$0xff]
    %v13 = vld [vmem:[%s0 + $0x8] sm:$0xff]
    %v14 = vld [vmem:[%s1] sm:$0xff]
    %v15 = vld [vmem:[%s1 + $0x8] sm:$0xff]
    %17 = vset.pattern.permute.xlu0 0
    %18 = vperm.xlu0 %17, %v15
    %v19 = vpop.permute.xlu0 %18
    %vm21 = vcmask 130048
    %v23 = vsel %vm21, %v14, 0
    %25 = vmatpush.msra.mxu0 0.0
    %26 = vmatpush.msra.mxu0 0.0
    %27 = vmatpush.msra.mxu0 0.0
    %28 = vmatpush.msra.mxu0 0.0
    %29 = vmatpush.msra.mxu0 0.0
    %30 = vmatpush.msra.mxu0 0.0
    %31 = vmatpush.msra.mxu0 0.0
    %32 = vmatpush.msra.mxu0 0.0
    %33 = vmatpush.msra.mxu0 0.0
    %34 = vmatpush.msra.mxu0 0.0
    %35 = vmatpush.msra.mxu0 0.0
    %36 = vmatpush.msra.mxu0 0.0
    %37 = vmatpush.msra.mxu0 0.0
    %38 = vmatpush.msra.mxu0 0.0
    %39 = vmatpush.msra.mxu0 %v13
    %40 = vmatpush.msra.mxu0 %v12
    %41 = vmatmul.f32.gmra.mxu0 %v23
    %v42 = vpop.f32.mrf.mxu0
    %v43 = vadd.f32 %v19, %v42
    %44 = vdwg.mxu0
    %v45 = vmax.f32 %v43, -30.0
    %v46 = vmin.f32 %v45, 30.0
    %v47 = vsub.f32 0.0, %v46
    %v48 = vmul.f32 %v47, 1.442695
    %v49 = vpow.pop %v48
    %v50 = vadd.f32 %v49, 1.0
    %v51 = vrcp.pop %v50
    %v52 = vld [vmem:[%s1 + $0x10] sm:$0xff]
    %v53 = vld [vmem:[%s1 + $0x18] sm:$0xff]
    %55 = vset.pattern.permute.xlu0 0
    %56 = vperm.xlu0 %55, %v53
    %v57 = vpop.permute.xlu0 %56
    %vm59 = vcmask 64512
    %v61 = vsel %vm59, %v52, 0
    %63 = vmatpush.msra.mxu0 0.0
    %64 = vmatpush.msra.mxu0 0.0
    %65 = vmatpush.msra.mxu0 0.0
    %66 = vmatpush.msra.mxu0 0.0
    %67 = vmatpush.msra.mxu0 0.0
    %68 = vmatpush.msra.mxu0 0.0
    %69 = vmatpush.msra.mxu0 0.0
    %70 = vmatpush.msra.mxu0 0.0
    %71 = vmatpush.msra.mxu0 0.0
    %72 = vmatpush.msra.mxu0 0.0
    %73 = vmatpush.msra.mxu0 0.0
    %74 = vmatpush.msra.mxu0 0.0
    %75 = vmatpush.msra.mxu0 0.0
    %76 = vmatpush.msra.mxu0 0.0
    %77 = vmatpush.msra.mxu0 0.0
    %78 = vmatpush.msra.mxu0 %v51
    %79 = vmatmul.f32.gmra.mxu0 %v61
    %v80 = vpop.f32.mrf.mxu0
    %v81 = vadd.f32 %v57, %v80
    %82 = vdwg.mxu0
    %v83 = vmax.f32 %v81, -30.0
    %v84 = vmin.f32 %v83, 30.0
    %v85 = vsub.f32 0.0, %v84
    %v86 = vmul.f32 %v85, 1.442695
    %v87 = vpow.pop %v86
    %v88 = vadd.f32 %v87, 1.0
    %v89 = vrcp.pop %v88
    %v90 = vld [vmem:[%s1 + $0x20] sm:$0xff]
    %v91 = vld [vmem:[%s1 + $0x28] sm:$0xff]
    %93 = vset.pattern.permute.xlu0 0
    %94 = vperm.xlu0 %93, %v91
    %v95 = vpop.permute.xlu0 %94
    %v98 = vsel %vm59, %v90, 0
    %100 = vmatpush.msra.mxu0 0.0
    %101 = vmatpush.msra.mxu0 0.0
    %102 = vmatpush.msra.mxu0 0.0
    %103 = vmatpush.msra.mxu0 0.0
    %104 = vmatpush.msra.mxu0 0.0
    %105 = vmatpush.msra.mxu0 0.0
    %106 = vmatpush.msra.mxu0 0.0
    %107 = vmatpush.msra.mxu0 0.0
    %108 = vmatpush.msra.mxu0 0.0
    %109 = vmatpush.msra.mxu0 0.0
    %110 = vmatpush.msra.mxu0 0.0
    %111 = vmatpush.msra.mxu0 0.0
    %112 = vmatpush.msra.mxu0 0.0
    %113 = vmatpush.msra.mxu0 0.0
    %114 = vmatpush.msra.mxu0 0.0
    %115 = vmatpush.msra.mxu0 %v89
    %116 = vmatmul.f32.gmra.mxu0 %v98
    %v117 = vpop.f32.mrf.mxu0
    %v118 = vadd.f32 %v95, %v117
    %119 = vdwg.mxu0
    %v120 = vmax.f32 %v118, -30.0
    %v121 = vmin.f32 %v120, 30.0
    %v122 = vsub.f32 0.0, %v121
    %v123 = vmul.f32 %v122, 1.442695
    %v124 = vpow.pop %v123
    %v125 = vadd.f32 %v124, 1.0
    %v126 = vrcp.pop %v125
    %v127 = vld [vmem:[%s1 + $0x30] sm:$0xff]
    %v128 = vld [vmem:[%s1 + $0x38] sm:$0xff]
    %130 = vset.pattern.permute.xlu0 0
    %131 = vperm.xlu0 %130, %v128
    %v132 = vpop.permute.xlu0 %131
    %v135 = vsel %vm59, %v127, 0
    %137 = vmatpush.msra.mxu0 0.0
    %138 = vmatpush.msra.mxu0 0.0
    %139 = vmatpush.msra.mxu0 0.0
    %140 = vmatpush.msra.mxu0 0.0
    %141 = vmatpush.msra.mxu0 0.0
    %142 = vmatpush.msra.mxu0 0.0
    %143 = vmatpush.msra.mxu0 0.0
    %144 = vmatpush.msra.mxu0 0.0
    %145 = vmatpush.msra.mxu0 0.0
    %146 = vmatpush.msra.mxu0 0.0
    %147 = vmatpush.msra.mxu0 0.0
    %148 = vmatpush.msra.mxu0 0.0
    %149 = vmatpush.msra.mxu0 0.0
    %150 = vmatpush.msra.mxu0 0.0
    %151 = vmatpush.msra.mxu0 0.0
    %152 = vmatpush.msra.mxu0 %v126
    %153 = vmatmul.f32.gmra.mxu0 %v135
    %v154 = vpop.f32.mrf.mxu0
    %v155 = vadd.f32 %v132, %v154
    %156 = vdwg.mxu0
    %v157 = vmax.f32 %v155, -30.0
    %v158 = vmin.f32 %v157, 30.0
    %v159 = vsub.f32 0.0, %v158
    %v160 = vmul.f32 %v159, 1.442695
    %v161 = vpow.pop %v160
    %v162 = vadd.f32 %v161, 1.0
    %v163 = vrcp.pop %v162
    %v164 = vld [vmem:[%s1 + $0x40] sm:$0xff]
    %v165 = vld [vmem:[%s1 + $0x48] sm:$0xff]
    %v166 = vld [vmem:[%s1 + $0x50] sm:$0xff]
    %v167 = vld [vmem:[%s1 + $0x58] sm:$0xff]
    %v168 = vld [vmem:[%s1 + $0x60] sm:$0xff]
    %v169 = vld [vmem:[%s1 + $0x68] sm:$0xff]
    %171 = vset.pattern.permute.xlu0 0
    %172 = vperm.xlu0 %171, %v167
    %v173 = vpop.permute.xlu0 %172
    %176 = vset.pattern.permute.xlu0 0
    %177 = vperm.xlu0 %176, %v168
    %v178 = vpop.permute.xlu0 %177
    %181 = vset.pattern.permute.xlu0 0
    %182 = vperm.xlu0 %181, %v169
    %v183 = vpop.permute.xlu0 %182
    %v186 = vsel %vm59, %v164, 0
    %v189 = vsel %vm59, %v165, 0
    %v192 = vsel %vm59, %v166, 0
    %194 = vmatpush.msra.mxu0 0.0
    %195 = vmatpush.msra.mxu0 0.0
    %196 = vmatpush.msra.mxu0 0.0
    %197 = vmatpush.msra.mxu0 0.0
    %198 = vmatpush.msra.mxu0 0.0
    %199 = vmatpush.msra.mxu0 0.0
    %200 = vmatpush.msra.mxu0 0.0
    %201 = vmatpush.msra.mxu0 0.0
    %202 = vmatpush.msra.mxu0 0.0
    %203 = vmatpush.msra.mxu0 0.0
    %204 = vmatpush.msra.mxu0 0.0
    %205 = vmatpush.msra.mxu0 0.0
    %206 = vmatpush.msra.mxu0 0.0
    %207 = vmatpush.msra.mxu0 0.0
    %208 = vmatpush.msra.mxu0 0.0
    %209 = vmatpush.msra.mxu0 %v163
    %210 = vmatmul.f32.gmra.mxu0 %v186
    %v211 = vpop.f32.mrf.mxu0
    %v212 = vadd.f32 %v173, %v211
    %213 = vmatmul.f32.gmra.mxu0 %v189
    %v214 = vpop.f32.mrf.mxu0
    %v215 = vadd.f32 %v178, %v214
    %216 = vmatmul.f32.gmra.mxu0 %v192
    %v217 = vpop.f32.mrf.mxu0
    %v218 = vadd.f32 %v183, %v217
    %219 = vdwg.mxu0
    %220 = vst [vmem:[#allocation2] sm:$0xff] %v212
    %221 = vst [vmem:[#allocation2 + $0x8] sm:$0xff] %v215
    %222 = vst [vmem:[#allocation2 + $0x10] sm:$0x3] %v218
    // Predicated region
    $region10: #{tpu_custom_call.1} parent=1 // pred_check
      _
    $region11: #{tpu_custom_call.1} parent=1 // pred_check_branch
      %224 = sbr.rel (0) target = $region13
    $region12: #{tpu_custom_call.1} parent=1 // pred_region
      %226 = vsyncadd [#allocation3], 0
      %s227 = sshll.u32 [#allocation2], 4
      %s228 = int_to_ptr.vmem [resolvable:$true] %s227
      %s229 = sshll.u32 %s2, 4
      %s230 = int_to_ptr.hbm [resolvable:$true] %s229
      %235 = dma.vmem_to_hbm [thread:$0]  %s228, 384, %s230, [#allocation3], 128, 128, 8
    $region13: #{tpu_custom_call.1} parent=1 // pred_fallthru
      _
    // Predicated region
    $region14: #{tpu_custom_call.1} parent=1 // pred_check
      _
    $region15: #{tpu_custom_call.1} parent=1 // pred_check_branch
      %237 = sbr.rel (0) target = $region17
    $region16: #{tpu_custom_call.1} parent=1 // pred_region
      %239 = dma.done [#allocation3], 384
    $region17: #{tpu_custom_call.1} parent=1 // pred_fallthru
      _
    %240 = vsyncpa [#allocation3], 1

</llo_original>
